<compile_context>
chip_gen: v7x
topology: tpu7x:2x2x1
jax: 0.10.0
libtpu: 0.0.40
codegen_flags: <defaults>
</compile_context>

<pallas_src>
import functools

import jax
import jax.numpy as jnp
from jax import lax
from jax.experimental import pallas as pl
from jax.experimental.pallas import tpu as pltpu

BN_EPS = 1e-3
_VMEM_LIMIT = 32 * 1024 * 1024       # explicit scoped-VMEM budget (safe on v5e/v6e/v7x)
_TILE_BYTES = 2 * 1024 * 1024        # per-block f32 budget for the streamed passes
_FUSED_MAX_BYTES = 2 * 1024 * 1024   # whole-x (f32) size below which we run one fused kernel


def _pick_lane_tile(hw, c):
    """Largest power-of-two lane tile (multiple of 128) within the VMEM budget.

    Returns hw itself when hw < 128 (a full spatial row is always a legal block dim).
    """
    if hw < 128:
        return hw
    budget_elems = max(_TILE_BYTES // (4 * max(c, 1)), 128)
    t = 128
    while t * 2 <= min(hw, budget_elems):
        t *= 2
    return t


# --------------------------------------------------------------------------
# Fused single-pass kernel (x fully resident in VMEM).
# --------------------------------------------------------------------------
def _fused_kernel(x_ref, w0_ref, g1_ref, b1_ref, o_ref, *, n_elems):
    # x_ref: (N, C, HW); w0_ref/g1_ref/b1_ref: (C, 1); o_ref: (N, C, HW)
    x = x_ref[...].astype(jnp.float32)

    s_n = jnp.sum(x, axis=2, keepdims=True)        # (N, C, 1) lane reduce
    ss_n = jnp.sum(x * x, axis=2, keepdims=True)   # (N, C, 1)
    s = s_n[0]
    ss = ss_n[0]
    for i in range(1, x.shape[0]):                 # N is small & static
        s = s + s_n[i]
        ss = ss + ss_n[i]

    inv_l = 1.0 / n_elems
    mean = s * inv_l                               # (C, 1)
    var = jnp.maximum(ss * inv_l - mean * mean, 0.0)
    inv_std = lax.rsqrt(var + BN_EPS)

    # g1 = w1 * gamma, b1 = w1 * beta, w0_ref holds broadcast(w0).
    a = w0_ref[...] + g1_ref[...] * inv_std                    # (C, 1)
    b = b1_ref[...] - g1_ref[...] * mean * inv_std             # (C, 1)
    o_ref[...] = (a[None] * x + b[None]).astype(o_ref.dtype)


def _adaptive_norm_fused(x3, w0f, w1f, g, bt):
    N, C, HW = x3.shape
    w0v = jnp.broadcast_to(w0f, (C, 1)).astype(jnp.float32)
    g1 = (w1f * g).reshape(C, 1).astype(jnp.float32)
    b1 = (w1f * bt).reshape(C, 1).astype(jnp.float32)

    kernel = functools.partial(_fused_kernel, n_elems=N * HW)
    return pl.pallas_call(
        kernel,
        out_shape=jax.ShapeDtypeStruct((N, C, HW), x3.dtype),
        grid=(1,),
        in_specs=[
            pl.BlockSpec((N, C, HW), lambda i: (0, 0, 0)),
            pl.BlockSpec((C, 1), lambda i: (0, 0)),
            pl.BlockSpec((C, 1), lambda i: (0, 0)),
            pl.BlockSpec((C, 1), lambda i: (0, 0)),
        ],
        out_specs=pl.BlockSpec((N, C, HW), lambda i: (0, 0, 0)),
        compiler_params=pltpu.CompilerParams(vmem_limit_bytes=_VMEM_LIMIT),
    )(x3, w0v, g1, b1)


# --------------------------------------------------------------------------
# Streamed two-pass kernels (large x).
# --------------------------------------------------------------------------
def _stats_kernel(x_ref, sum_ref, sumsq_ref, *, rem, n_t):
    # x_ref:               VMEM (1, C, T)
    # sum_ref / sumsq_ref: VMEM (1, C, 1) per-n resident accumulators
    @pl.when(pl.program_id(1) == 0)
    def _():
        sum_ref[...] = jnp.zeros_like(sum_ref)
        sumsq_ref[...] = jnp.zeros_like(sumsq_ref)

    x = x_ref[0].astype(jnp.float32)                       # (C, T)
    if rem:  # static: mask the padded tail of the last spatial tile
        t = pl.program_id(1)
        lane = lax.broadcasted_iota(jnp.int32, x.shape, 1)
        limit = jnp.where(t == n_t - 1, rem, x.shape[1])
        x = jnp.where(lane < limit, x, 0.0)

    sum_ref[0] += jnp.sum(x, axis=1, keepdims=True)        # (C, 1)
    sumsq_ref[0] += jnp.sum(x * x, axis=1, keepdims=True)  # (C, 1)


def _norm_kernel(x_ref, a_ref, b_ref, o_ref):
    # x_ref: VMEM (1, C, T); a_ref/b_ref: VMEM (C, 1); o_ref: VMEM (1, C, T)
    x = x_ref[0].astype(jnp.float32)                       # (C, T)
    o_ref[0] = (a_ref[...] * x + b_ref[...]).astype(o_ref.dtype)


def _adaptive_norm_two_pass(x3, w0f, w1f, g, bt):
    N, C, HW = x3.shape
    L = N * HW
    T = _pick_lane_tile(HW, C)
    n_t = pl.cdiv(HW, T)
    rem = HW % T

    # ---- pass 1: per-(n, channel) partial sum / sum-of-squares ------------
    stats_kernel = functools.partial(_stats_kernel, rem=rem, n_t=n_t)
    psum, psumsq = pl.pallas_call(
        stats_kernel,
        out_shape=(
            jax.ShapeDtypeStruct((N, C, 1), jnp.float32),
            jax.ShapeDtypeStruct((N, C, 1), jnp.float32),
        ),
        grid=(N, n_t),
        in_specs=[pl.BlockSpec((1, C, T), lambda n, t: (n, 0, t))],
        out_specs=(
            pl.BlockSpec((1, C, 1), lambda n, t: (n, 0, 0)),
            pl.BlockSpec((1, C, 1), lambda n, t: (n, 0, 0)),
        ),
        compiler_params=pltpu.CompilerParams(
            dimension_semantics=("parallel", "arbitrary"),
            vmem_limit_bytes=_VMEM_LIMIT,
        ),
    )(x3)

    # ---- fold BN + adaptive weights into per-channel scale / bias ---------
    sum_x = jnp.sum(psum[:, :, 0], axis=0)                 # (C,)
    sum_xx = jnp.sum(psumsq[:, :, 0], axis=0)              # (C,)
    mean = sum_x / L
    var = jnp.maximum(sum_xx / L - mean * mean, 0.0)
    inv_std = lax.rsqrt(var + BN_EPS)
    a = (w0f + w1f * g * inv_std).reshape(C, 1)
    b = (w1f * (bt - g * mean * inv_std)).reshape(C, 1)

    # ---- pass 2: elementwise out = a * x + b ------------------------------
    return pl.pallas_call(
        _norm_kernel,
        out_shape=jax.ShapeDtypeStruct((N, C, HW), x3.dtype),
        grid=(N, n_t),
        in_specs=[
            pl.BlockSpec((1, C, T), lambda n, t: (n, 0, t)),
            pl.BlockSpec((C, 1), lambda n, t: (0, 0)),
            pl.BlockSpec((C, 1), lambda n, t: (0, 0)),
        ],
        out_specs=pl.BlockSpec((1, C, T), lambda n, t: (n, 0, t)),
        compiler_params=pltpu.CompilerParams(
            dimension_semantics=("parallel", "parallel"),
            vmem_limit_bytes=_VMEM_LIMIT,
        ),
    )(x3, a, b)


# --------------------------------------------------------------------------
# Public entry point.
# --------------------------------------------------------------------------
def adaptive_norm(x, w0, w1, gamma, beta, *, force_two_pass=False):
    """x: (N, C, H, W).  Returns w0*x + w1*BatchNorm2d(x) (training-mode BN)."""
    N, C, H, W = x.shape
    HW = H * W

    x3 = x.reshape(N, C, HW)  # contiguous reshape, no HBM transpose
    w0f = jnp.asarray(w0, jnp.float32).reshape(())
    w1f = jnp.asarray(w1, jnp.float32).reshape(())
    g = gamma.astype(jnp.float32)
    bt = beta.astype(jnp.float32)

    if (not force_two_pass) and (N * C * HW * 4 <= _FUSED_MAX_BYTES):
        out3 = _adaptive_norm_fused(x3, w0f, w1f, g, bt)
    else:
        out3 = _adaptive_norm_two_pass(x3, w0f, w1f, g, bt)
    return out3.reshape(N, C, H, W)


def adaptive_norm_ref(x, w0, w1, gamma, beta):
    """Pure-JAX reference (training-mode BatchNorm2d, biased variance)."""
    mean = jnp.mean(x, axis=(0, 2, 3), keepdims=True)
    var = jnp.mean((x - mean) ** 2, axis=(0, 2, 3), keepdims=True)
    bn = gamma.reshape(1, -1, 1, 1) * (x - mean) / jnp.sqrt(var + BN_EPS) \
        + beta.reshape(1, -1, 1, 1)
    return w0 * x + w1 * bn


if __name__ == "__main__":
    key = jax.random.PRNGKey(0)
    kx, kg, kb, kx2 = jax.random.split(key, 4)

    # PyTorch __init__ values are w_0=1.0, w_1=0.0, gamma=1, beta=0 (which makes
    # the BN branch a no-op).  Use non-trivial deterministic values so the full
    # kernel path is exercised; semantics are identical.
    C = 4
    w0 = jnp.array([1.0], dtype=jnp.float32)
    w1 = jnp.array([0.5], dtype=jnp.float32)
    gamma = 1.0 + 0.1 * jax.random.normal(kg, (C,), dtype=jnp.float32)
    beta = 0.1 * jax.random.normal(kb, (C,), dtype=jnp.float32)

    # --- fused single-pass path (small, VMEM-resident input) ---------------
    N, H, W = 2, 16, 16
    x = jax.random.normal(kx, (N, C, H, W), dtype=jnp.float32)
    out = jax.block_until_ready(adaptive_norm(x, w0, w1, gamma, beta))
    ref = adaptive_norm_ref(x, w0, w1, gamma, beta)
    assert out.shape == (N, C, H, W)
    assert jnp.allclose(out, ref, atol=1e-4, rtol=1e-4), \
        f"fused path max abs err {jnp.max(jnp.abs(out - ref))}"

    # --- streamed two-pass path (also exercises the masked spatial tail) ---
    N2, H2, W2 = 2, 33, 100   # HW = 3300, not a multiple of 128
    x2 = jax.random.normal(kx2, (N2, C, H2, W2), dtype=jnp.float32)
    out2 = jax.block_until_ready(
        adaptive_norm(x2, w0, w1, gamma, beta, force_two_pass=True))
    ref2 = adaptive_norm_ref(x2, w0, w1, gamma, beta)
    assert out2.shape == (N2, C, H2, W2)
    assert jnp.allclose(out2, ref2, atol=1e-4, rtol=1e-4), \
        f"two-pass path max abs err {jnp.max(jnp.abs(out2 - ref2))}"

    # TODO(synk): BatchNorm2d running_mean/running_var updates (momentum=0.999)
    # are training-state side effects and do not affect the forward output.
    print("KERNEL_OK")
</pallas_src>

<mosaic_0001>
module attributes {stable_mosaic.version = 11 : i64} {
  func.func @_fused_kernel(%arg0: i32, %arg1: memref<2x4x256xf32, #tpu.memory_space<vmem>>, %arg2: memref<4x1xf32, #tpu.memory_space<vmem>>, %arg3: memref<4x1xf32, #tpu.memory_space<vmem>>, %arg4: memref<4x1xf32, #tpu.memory_space<vmem>>, %arg5: memref<2x4x256xf32, #tpu.memory_space<vmem>>) attributes {dimension_semantics = [#tpu.dimension_semantics<arbitrary>], iteration_bounds = array<i64: 1>, scalar_prefetch = 0 : i64, scratch_operands = 0 : i64, tpu.core_type = #tpu.core_type<tc>, window_params = [{pipeline_mode = #tpu.pipeline_mode<synchronous>, transform_indices = @transform_0, window_bounds = array<i64: 2, 4, 256>}, {pipeline_mode = #tpu.pipeline_mode<synchronous>, transform_indices = @transform_1, window_bounds = array<i64: 4, 1>}, {pipeline_mode = #tpu.pipeline_mode<synchronous>, transform_indices = @transform_2, window_bounds = array<i64: 4, 1>}, {pipeline_mode = #tpu.pipeline_mode<synchronous>, transform_indices = @transform_3, window_bounds = array<i64: 4, 1>}, {pipeline_mode = #tpu.pipeline_mode<synchronous>, transform_indices = @transform_4, window_bounds = array<i64: 2, 4, 256>}]} {
    %c0 = arith.constant 0 : index
    %c0_0 = arith.constant 0 : index
    %c0_1 = arith.constant 0 : index
    %0 = vector.load %arg1[%c0, %c0_0, %c0_1] : memref<2x4x256xf32, #tpu.memory_space<vmem>>, vector<2x4x256xf32>
    %cst = arith.constant dense<0.000000e+00> : vector<2x4xf32>
    %1 = vector.multi_reduction <add>, %0, %cst [2] : vector<2x4x256xf32> to vector<2x4xf32>
    %2 = vector.shape_cast %1 : vector<2x4xf32> to vector<2x4x1xf32>
    %3 = arith.mulf %0, %0 : vector<2x4x256xf32>
    %cst_2 = arith.constant dense<0.000000e+00> : vector<2x4xf32>
    %4 = vector.multi_reduction <add>, %3, %cst_2 [2] : vector<2x4x256xf32> to vector<2x4xf32>
    %5 = vector.shape_cast %4 : vector<2x4xf32> to vector<2x4x1xf32>
    %6 = vector.extract_strided_slice %2 {offsets = [0, 0, 0], sizes = [1, 4, 1], strides = [1, 1, 1]} : vector<2x4x1xf32> to vector<1x4x1xf32>
    %7 = vector.shape_cast %6 : vector<1x4x1xf32> to vector<4x1xf32>
    %8 = vector.extract_strided_slice %5 {offsets = [0, 0, 0], sizes = [1, 4, 1], strides = [1, 1, 1]} : vector<2x4x1xf32> to vector<1x4x1xf32>
    %9 = vector.shape_cast %8 : vector<1x4x1xf32> to vector<4x1xf32>
    %10 = vector.extract_strided_slice %2 {offsets = [1, 0, 0], sizes = [1, 4, 1], strides = [1, 1, 1]} : vector<2x4x1xf32> to vector<1x4x1xf32>
    %11 = vector.shape_cast %10 : vector<1x4x1xf32> to vector<4x1xf32>
    %12 = arith.addf %7, %11 : vector<4x1xf32>
    %13 = vector.extract_strided_slice %5 {offsets = [1, 0, 0], sizes = [1, 4, 1], strides = [1, 1, 1]} : vector<2x4x1xf32> to vector<1x4x1xf32>
    %14 = vector.shape_cast %13 : vector<1x4x1xf32> to vector<4x1xf32>
    %15 = arith.addf %9, %14 : vector<4x1xf32>
    %cst_3 = arith.constant 0.001953125 : f32
    %16 = vector.broadcast %cst_3 : f32 to vector<4x1xf32>
    %17 = arith.mulf %12, %16 : vector<4x1xf32>
    %cst_4 = arith.constant 0.001953125 : f32
    %18 = vector.broadcast %cst_4 : f32 to vector<4x1xf32>
    %19 = arith.mulf %15, %18 : vector<4x1xf32>
    %20 = arith.mulf %17, %17 : vector<4x1xf32>
    %21 = arith.subf %19, %20 : vector<4x1xf32>
    %cst_5 = arith.constant 0.000000e+00 : f32
    %22 = vector.broadcast %cst_5 : f32 to vector<4x1xf32>
    %23 = arith.maximumf %21, %22 : vector<4x1xf32>
    %cst_6 = arith.constant 1.000000e-03 : f32
    %24 = vector.broadcast %cst_6 : f32 to vector<4x1xf32>
    %25 = arith.addf %23, %24 : vector<4x1xf32>
    %26 = math.rsqrt %25 : vector<4x1xf32>
    %c0_7 = arith.constant 0 : index
    %c0_8 = arith.constant 0 : index
    %27 = vector.load %arg2[%c0_7, %c0_8] : memref<4x1xf32, #tpu.memory_space<vmem>>, vector<4x1xf32>
    %c0_9 = arith.constant 0 : index
    %c0_10 = arith.constant 0 : index
    %28 = vector.load %arg3[%c0_9, %c0_10] : memref<4x1xf32, #tpu.memory_space<vmem>>, vector<4x1xf32>
    %29 = arith.mulf %28, %26 : vector<4x1xf32>
    %30 = arith.addf %27, %29 : vector<4x1xf32>
    %c0_11 = arith.constant 0 : index
    %c0_12 = arith.constant 0 : index
    %31 = vector.load %arg4[%c0_11, %c0_12] : memref<4x1xf32, #tpu.memory_space<vmem>>, vector<4x1xf32>
    %c0_13 = arith.constant 0 : index
    %c0_14 = arith.constant 0 : index
    %32 = vector.load %arg3[%c0_13, %c0_14] : memref<4x1xf32, #tpu.memory_space<vmem>>, vector<4x1xf32>
    %33 = arith.mulf %32, %17 : vector<4x1xf32>
    %34 = arith.mulf %33, %26 : vector<4x1xf32>
    %35 = arith.subf %31, %34 : vector<4x1xf32>
    %36 = vector.shape_cast %30 : vector<4x1xf32> to vector<1x4x1xf32>
    %37 = vector.broadcast %36 : vector<1x4x1xf32> to vector<2x4x256xf32>
    %38 = arith.mulf %37, %0 : vector<2x4x256xf32>
    %39 = vector.shape_cast %35 : vector<4x1xf32> to vector<1x4x1xf32>
    %40 = vector.broadcast %39 : vector<1x4x1xf32> to vector<2x4x256xf32>
    %41 = arith.addf %38, %40 : vector<2x4x256xf32>
    %c0_15 = arith.constant 0 : index
    %c0_16 = arith.constant 0 : index
    %c0_17 = arith.constant 0 : index
    %42 = vector.load %arg5[%c0_15, %c0_16, %c0_17] : memref<2x4x256xf32, #tpu.memory_space<vmem>>, vector<2x4x256xf32>
    tpu.vector_store %arg5[%c0_15, %c0_16, %c0_17], %41 {strides = array<i32>} : memref<2x4x256xf32, #tpu.memory_space<vmem>>, vector<2x4x256xf32>,
    return
  }
  func.func @transform_0(%arg0: i32) -> (i32, i32, i32) {
    %c0_i32 = arith.constant 0 : i32
    %c0_i32_0 = arith.constant 0 : i32
    %c0_i32_1 = arith.constant 0 : i32
    %c0_i32_2 = arith.constant 0 : i32
    return %c0_i32, %c0_i32_0, %c0_i32_1 : i32, i32, i32
  }
  func.func @transform_1(%arg0: i32) -> (i32, i32) {
    %c0_i32 = arith.constant 0 : i32
    %c0_i32_0 = arith.constant 0 : i32
    %c0_i32_1 = arith.constant 0 : i32
    return %c0_i32, %c0_i32_0 : i32, i32
  }
  func.func @transform_2(%arg0: i32) -> (i32, i32) {
    %c0_i32 = arith.constant 0 : i32
    %c0_i32_0 = arith.constant 0 : i32
    %c0_i32_1 = arith.constant 0 : i32
    return %c0_i32, %c0_i32_0 : i32, i32
  }
  func.func @transform_3(%arg0: i32) -> (i32, i32) {
    %c0_i32 = arith.constant 0 : i32
    %c0_i32_0 = arith.constant 0 : i32
    %c0_i32_1 = arith.constant 0 : i32
    return %c0_i32, %c0_i32_0 : i32, i32
  }
  func.func @transform_4(%arg0: i32) -> (i32, i32, i32) {
    %c0_i32 = arith.constant 0 : i32
    %c0_i32_0 = arith.constant 0 : i32
    %c0_i32_1 = arith.constant 0 : i32
    %c0_i32_2 = arith.constant 0 : i32
    return %c0_i32, %c0_i32_0, %c0_i32_1 : i32, i32, i32
  }
}

</mosaic_0001>

<llo_original>
// kernel: tpu_custom_call.1
$region0: #{tpu_custom_call.1}
  #allocation0 [shape = 'u32[]', space=smem, size = 0x4, offset = 0x4, fixed_abs, tag = 'smem constant byte address 0x4 - core index']
  #allocation1 [shape = 'u32[144,128]{1,0:T(1,128)}', space=vmem, size = 0x12000, scoped, tag = 'internal scratch']
  %s0 = inlined_call_operand.hbm [shape: f32[2,4,256], index: 0, kind: input, shape index: {}]
  %s1 = inlined_call_operand.vmem [shape: f32[4,1], index: 1, kind: input, shape index: {}]
  %s2 = inlined_call_operand.vmem [shape: f32[4,1], index: 2, kind: input, shape index: {}]
  %s3 = inlined_call_operand.vmem [shape: f32[4,1], index: 3, kind: input, shape index: {}]
  %s4 = inlined_call_operand.hbm [shape: f32[2,4,256], index: 4, kind: output, shape index: {}]
  %s5 = sld [smem:[#allocation0]]
  $region30: #{tpu_custom_call.1} parent=0
    _
  %s7 = ssub.s32 1, %s5
  %s8 = scalar_select 0, %s7, %s5
  $region1: #{tpu_custom_call.1} parent=0
    #allocation2 [shape = 'u8[8192]{0}', space=vmem, size = 0x2000, scoped, tag = 'input window, operand 0, single buffered']
    #allocation3 [shape = 's32[1]{0}', space=sflag, size = 0x4, scoped, tag = 'scoped memory for tpu_custom_call.1']
    #allocation4 [shape = 's32[1]{0}', space=sflag, size = 0x4, scoped, tag = 'scoped memory for tpu_custom_call.1']
    #allocation5 [shape = 'u8[8192]{0}', space=vmem, size = 0x2000, scoped, tag = 'output window, operand 0, single buffered']
    %9 = vsyncpa [#allocation3], 0
    %10 = vsyncpa [#allocation4], 0
    // Predicated region
    $region2: #{tpu_custom_call.1} parent=1 // pred_check
      _
    $region3: #{tpu_custom_call.1} parent=1 // pred_check_branch
      %12 = sbr.rel (0) target = $region5
    $region4: #{tpu_custom_call.1} parent=1 // pred_region
      %s14 = ssub.s32 256, 256
      %15 = vsyncadd [#allocation3], %s14
      %s16 = sshll.u32 [#allocation2], 4
      %s17 = int_to_ptr.vmem [resolvable:$true] %s16
      %22 = dma.hbm_to_vmem [thread:$0]  %s0, 256, %s17, [#allocation3], 128, 128, 8
    $region5: #{tpu_custom_call.1} parent=1 // pred_fallthru
      _
    // Predicated region
    $region6: #{tpu_custom_call.1} parent=1 // pred_check
      _
    $region7: #{tpu_custom_call.1} parent=1 // pred_check_branch
      %24 = sbr.rel (0) target = $region9
    $region8: #{tpu_custom_call.1} parent=1 // pred_region
      _
    $region9: #{tpu_custom_call.1} parent=1 // pred_fallthru
      _
    // Predicated region
    $region10: #{tpu_custom_call.1} parent=1 // pred_check
      _
    $region11: #{tpu_custom_call.1} parent=1 // pred_check_branch
      %26 = sbr.rel (0) target = $region13
    $region12: #{tpu_custom_call.1} parent=1 // pred_region
      _
    $region13: #{tpu_custom_call.1} parent=1 // pred_fallthru
      _
    // Predicated region
    $region14: #{tpu_custom_call.1} parent=1 // pred_check
      _
    $region15: #{tpu_custom_call.1} parent=1 // pred_check_branch
      %28 = sbr.rel (0) target = $region17
    $region16: #{tpu_custom_call.1} parent=1 // pred_region
      _
    $region17: #{tpu_custom_call.1} parent=1 // pred_fallthru
      _
    // Predicated region
    $region18: #{tpu_custom_call.1} parent=1 // pred_check
      _
    $region19: #{tpu_custom_call.1} parent=1 // pred_check_branch
      %30 = sbr.rel (0) target = $region21
    $region20: #{tpu_custom_call.1} parent=1 // pred_region
      %31 = dma.done [#allocation3], 256
    $region21: #{tpu_custom_call.1} parent=1 // pred_fallthru
      _
    %v32 = vld [vmem:[#allocation2] sm:$0xff]
    %v33 = vld [vmem:[#allocation2 + $0x8] sm:$0xff]
    %v36 = vcombine.high %v32, %v32
    %v37 = vcombine.high %v33, %v33
    %vm40 = vcmask 1043456
    %v41 = vsel %vm40, %v32, 0.0
    %v42 = vsel %vm40, %v36, 0.0
    %v43 = vadd.f32 %v41, %v42
    %44 = vadd.xlane.f32.xlu0 %v43
    %v45 = vpop.xlane.xlu0 %44
    %v46 = vsel %vm40, %v33, 0.0
    %v47 = vsel %vm40, %v37, 0.0
    %v48 = vadd.f32 %v46, %v47
    %49 = vadd.xlane.f32.xlu0 %v48
    %v50 = vpop.xlane.xlu0 %49
    %v51 = vmul.f32 %v32, %v32
    %v52 = vmul.f32 %v33, %v33
    %v55 = vcombine.high %v51, %v51
    %v56 = vcombine.high %v52, %v52
    %v59 = vsel %vm40, %v51, 0.0
    %v60 = vsel %vm40, %v55, 0.0
    %v61 = vadd.f32 %v59, %v60
    %62 = vadd.xlane.f32.xlu0 %v61
    %v63 = vpop.xlane.xlu0 %62
    %v64 = vsel %vm40, %v52, 0.0
    %v65 = vsel %vm40, %v56, 0.0
    %v66 = vadd.f32 %v64, %v65
    %67 = vadd.xlane.f32.xlu0 %v66
    %v68 = vpop.xlane.xlu0 %67
    %v69 = vadd.f32 %v45, %v50
    %v70 = vadd.f32 %v63, %v68
    %v71 = vmul.f32 %v69, 0.001953125
    %v72 = vmul.f32 %v70, 0.001953125
    %v73 = vmul.f32 %v71, %v71
    %v74 = vsub.f32 %v72, %v73
    %v75 = vmax.f32 %v74, 0.0
    %v76 = vadd.f32 %v75, 0.001
    %v77 = vrsqrt.pop %v76
    %v78 = vld [vmem:[%s1] sm:$0xf]
    %v79 = vld [vmem:[%s2] sm:$0xf]
    %v80 = vmul.f32 %v79, %v77
    %v81 = vadd.f32 %v78, %v80
    %v82 = vld [vmem:[%s3] sm:$0xf]
    %v83 = vmul.f32 %v79, %v71
    %v84 = vmul.f32 %v83, %v77
    %v85 = vsub.f32 %v82, %v84
    %87 = vset.pattern.permute.xlu0 0
    %88 = vperm.xlu0 %87, %v81
    %v89 = vpop.permute.xlu0 %88
    %v91 = vmul.f32 %v89, %v32
    %v92 = vmul.f32 %v89, %v36
    %v93 = vmul.f32 %v89, %v33
    %v94 = vmul.f32 %v89, %v37
    %96 = vset.pattern.permute.xlu0 0
    %97 = vperm.xlu0 %96, %v85
    %v98 = vpop.permute.xlu0 %97
    %v100 = vadd.f32 %v91, %v98
    %v101 = vadd.f32 %v92, %v98
    %v102 = vadd.f32 %v93, %v98
    %v103 = vadd.f32 %v94, %v98
    %v108 = vcombine.low %v100, %v101
    %v109 = vcombine.low %v102, %v103
    %112 = vst [vmem:[#allocation5] sm:$0xff] %v108
    %113 = vst [vmem:[#allocation5 + $0x8] sm:$0xff] %v109
    // Predicated region
    $region22: #{tpu_custom_call.1} parent=1 // pred_check
      _
    $region23: #{tpu_custom_call.1} parent=1 // pred_check_branch
      %115 = sbr.rel (0) target = $region25
    $region24: #{tpu_custom_call.1} parent=1 // pred_region
      %s117 = ssub.s32 256, 256
      %118 = vsyncadd [#allocation4], %s117
      %s119 = sshll.u32 [#allocation5], 4
      %s120 = int_to_ptr.vmem [resolvable:$true] %s119
      %125 = dma.vmem_to_hbm [thread:$0]  %s120, 256, %s4, [#allocation4], 128, 128, 8
    $region25: #{tpu_custom_call.1} parent=1 // pred_fallthru
      _
    // Predicated region
    $region26: #{tpu_custom_call.1} parent=1 // pred_check
      _
    $region27: #{tpu_custom_call.1} parent=1 // pred_check_branch
      %127 = sbr.rel (0) target = $region29
    $region28: #{tpu_custom_call.1} parent=1 // pred_region
      %128 = dma.done [#allocation4], 256
    $region29: #{tpu_custom_call.1} parent=1 // pred_fallthru
      _
    %129 = vsyncpa [#allocation3], 1
    %130 = vsyncpa [#allocation4], 1

</llo_original>
